<compile_context>
chip_gen: v5e
topology: v5e:2x2
jax: 0.10.0
libtpu: 0.0.40
codegen_flags: <defaults>
</compile_context>

<pallas_src>
import jax
import jax.numpy as jnp
from jax.experimental import pallas as pl
from jax.experimental.pallas import tpu as pltpu


def _round_up(x, m):
    return (x + m - 1) // m * m


def _cdiv(a, b):
    return -(-a // b)


# ----------------------------------------------------------------------------
# Pallas kernel: weighted augmented Gram (shifted frame) over the point dim
# ----------------------------------------------------------------------------
def _wgram_kernel(src_ref, tgt_ref, w_ref, osrc_ref, otgt_ref, s_ref, acc_ref):
    # src_ref : (bblk, 3, nblk)   source points, channel-major
    # tgt_ref : (bblk, 3, nblk)   target points, channel-major
    # w_ref   : (bblk, 1, nblk)   per-point weights (zero in padded columns)
    # osrc_ref, otgt_ref : (bblk, 3, 1) per-batch reference points
    # s_ref   : (bblk, 1, 16)     row-major flattened 4x4 Gram S' with
    #             S'[i,j] = sum_n (t_i - b_i) * w * (s_j - a_j)   i,j in 0..2
    #             S'[i,3] = sum_n (t_i - b_i) * w
    #             S'[3,j] = sum_n w * (s_j - a_j)
    #             S'[3,3] = sum_n w
    # acc_ref : (bblk, 16) f32 VMEM scratch accumulator
    j = pl.program_id(1)

    @pl.when(j == 0)
    def _init():
        acc_ref[...] = jnp.zeros_like(acc_ref)

    w = w_ref[...]                                        # (bblk, 1, nblk)
    src_c = src_ref[...] - osrc_ref[...]                  # (bblk, 3, nblk)
    ws = src_c * w                                        # w * (src - a)

    cols = []
    for i in range(3):                                    # unrolled, tiny
        t_i = tgt_ref[:, i:i + 1, :] - otgt_ref[:, i:i + 1, :]   # (bblk,1,nblk)
        cols.append(jnp.sum(ws * t_i, axis=-1))           # S'[i, 0:3]  (bblk, 3)
        cols.append(jnp.sum(w * t_i, axis=-1))            # S'[i, 3]    (bblk, 1)
    cols.append(jnp.sum(ws, axis=-1))                     # S'[3, 0:3]  (bblk, 3)
    cols.append(jnp.sum(w, axis=-1))                      # S'[3, 3]    (bblk, 1)

    acc_ref[...] += jnp.concatenate(cols, axis=-1)        # (bblk, 16)

    @pl.when(j == pl.num_programs(1) - 1)
    def _store():
        s_ref[...] = acc_ref[...].reshape(s_ref.shape)


def weighted_gram(src, tgt, weights, off_src, off_tgt,
                  *, max_block_bytes=8 * 1024 * 1024):
    """src, tgt: (B, 3, N); weights: (B, 1, N); off_*: (B, 3, 1).
    Returns S': (B, 4, 4) f32, the weighted augmented Gram of the SHIFTED
    coordinates (src - off_src), (tgt - off_tgt)."""
    src = src.astype(jnp.float32)
    tgt = tgt.astype(jnp.float32)
    weights = weights.astype(jnp.float32)
    off_src = off_src.astype(jnp.float32)
    off_tgt = off_tgt.astype(jnp.float32)

    B, C, N = src.shape
    assert C == 3 and tgt.shape == (B, 3, N) and weights.shape == (B, 1, N)

    # Batch blocking: exact divisor of B (no batch padding), >= 2 blocks when
    # B >= 2 so the "parallel" axis feeds both v7x TensorCores.
    if B == 1:
        bblk = 1
    else:
        bblk = max(d for d in range(1, min(B, 64) + 1)
                   if B % d == 0 and B // d >= 2)
    grid_b = B // bblk

    # N chunking: pad only to a multiple of 128; pick the chunk size from an
    # ~8 MiB per-step byte budget so padding never exceeds a sliver.
    n128 = _round_up(max(N, 1), 128)
    bytes_per_col = bblk * 7 * 4                    # src(3) + tgt(3) + w(1), f32
    nblk_cap = max(128, (max_block_bytes // bytes_per_col) // 128 * 128)
    n_chunks = _cdiv(n128, nblk_cap)
    nblk = _round_up(_cdiv(n128, n_chunks), 128)
    n_pad = nblk * n_chunks

    if n_pad != N:
        pn = n_pad - N
        # Padded columns carry w == 0, so they are exactly neutral.
        src = jnp.pad(src, ((0, 0), (0, 0), (0, pn)))
        tgt = jnp.pad(tgt, ((0, 0), (0, 0), (0, pn)))
        weights = jnp.pad(weights, ((0, 0), (0, 0), (0, pn)))

    out = pl.pallas_call(
        _wgram_kernel,
        out_shape=jax.ShapeDtypeStruct((B, 1, 16), jnp.float32),
        grid=(grid_b, n_chunks),
        in_specs=[
            pl.BlockSpec((bblk, 3, nblk), lambda i, j: (i, 0, j)),   # src
            pl.BlockSpec((bblk, 3, nblk), lambda i, j: (i, 0, j)),   # tgt
            pl.BlockSpec((bblk, 1, nblk), lambda i, j: (i, 0, j)),   # w
            pl.BlockSpec((bblk, 3, 1), lambda i, j: (i, 0, 0)),      # off_src
            pl.BlockSpec((bblk, 3, 1), lambda i, j: (i, 0, 0)),      # off_tgt
        ],
        out_specs=pl.BlockSpec((bblk, 1, 16), lambda i, j: (i, 0, 0)),
        scratch_shapes=[pltpu.VMEM((bblk, 16), jnp.float32)],
        compiler_params=pltpu.CompilerParams(
            dimension_semantics=("parallel", "arbitrary"),
            vmem_limit_bytes=48 * 1024 * 1024,
        ),
    )(src, tgt, weights, off_src, off_tgt)

    return out.reshape(B, 4, 4)


# ----------------------------------------------------------------------------
# SVD module (forward semantics of the PyTorch class)
# ----------------------------------------------------------------------------
class SVD:
    def __init__(self, config, IS_MONO_CUT=False, dataset_type="NCLT"):
        self.config = config
        self.window_size = config["window_size"]
        self.gpuid = config.get("gpuid", 0)
        self.IS_MONO_CUT = IS_MONO_CUT
        self.dataset_type = dataset_type

    def compute_weighted_svd(self, src_coords, tgt_coords, weights, B, gt_Rt):
        src = src_coords.astype(jnp.float32)
        tgt = tgt_coords.astype(jnp.float32)
        w = weights.astype(jnp.float32)

        # Per-batch reference points (first keypoint); the kernel centers on
        # these, keeping the single-pass Gram well conditioned in f32.
        off_src = src[:, :, 0:1]                          # (B, 3, 1)
        off_tgt = tgt[:, :, 0:1]                          # (B, 3, 1)

        # Hot path: single fused weighted-Gram reduction in Pallas.
        S = weighted_gram(src, tgt, w, off_src, off_tgt)  # (B, 4, 4), shifted

        sigma = S[:, 3, 3]                                # sum_n w
        w_den = sigma + 0.0001                            # matches torch +1e-4
        inv_w = (1.0 / w_den)[:, None, None]              # (B, 1, 1)

        # Exact de-shift of the weighted first moments -> centroids.
        src_centroid = (S[:, 3, 0:3][:, :, None]
                        + sigma[:, None, None] * off_src) * inv_w   # (B, 3, 1)
        tgt_centroid = (S[:, 0:3, 3][:, :, None]
                        + sigma[:, None, None] * off_tgt) * inv_w   # (B, 3, 1)

        # Centered weighted covariance (translation-invariant) from the
        # shifted Gram:  W = (S00 - 2*M/w_den + M*sigma/w_den^2) / w_den,
        # with M = (sum w*t')(sum w*s')^T.
        M = jnp.matmul(S[:, 0:3, 3:4], S[:, 3:4, 0:3])    # (B, 3, 3)
        W = (S[:, 0:3, 0:3] - 2.0 * M * inv_w
             + M * (sigma[:, None, None] * inv_w * inv_w)) * inv_w

        # TODO(synk): 3x3 batched SVD / det have no Pallas primitive; plain JAX glue.
        U, _, Vh = jnp.linalg.svd(W)                      # W = U diag(s) Vh
        # torch.svd returns V with W = U S V^T, so V = Vh^T and det(V) = det(Vh).
        det_UV = jnp.linalg.det(U) * jnp.linalg.det(Vh)   # (B,)
        ones = jnp.ones((B, 2), dtype=W.dtype)
        s_diag = jnp.concatenate([ones, det_UV[:, None]], axis=1)   # (B, 3)
        R_tgt_src = jnp.einsum("bij,bj,bjk->bik", U, s_diag, Vh)

        Rm = gt_Rt[:, :3, :3].astype(jnp.float32) if gt_Rt is not None else R_tgt_src
        t_tgt_src_insrc = src_centroid - jnp.einsum("bji,bjk->bik", Rm, tgt_centroid)
        t_src_tgt_intgt = -jnp.einsum("bij,bjk->bik", Rm, t_tgt_src_insrc)
        return R_tgt_src, t_src_tgt_intgt

    def forward(self, src_coords, tgt_coords, weights,
                convert_from_pixels=False, gt_Rt=None):
        # TODO(synk): get_indices / convert_to_radar_frame helpers are external to the
        # module; this version assumes metric coords (convert_from_pixels=False)
        # and matched batch sizes.
        assert src_coords.shape == tgt_coords.shape
        B = src_coords.shape[0]

        if src_coords.shape[2] < 3:
            pad = 3 - src_coords.shape[2]
            src_coords = jnp.pad(src_coords, ((0, 0), (0, 0), (0, pad)))
        if tgt_coords.shape[2] < 3:
            pad = 3 - tgt_coords.shape[2]
            tgt_coords = jnp.pad(tgt_coords, ((0, 0), (0, 0), (0, pad)))

        # Remaining prep copy (mirrors the PyTorch module). If the producer can
        # supply channel-major (B, 3, N) coords, call compute_weighted_svd
        # directly and this copy disappears.
        src_coords = jnp.transpose(src_coords, (0, 2, 1))   # (B, 3, N)
        tgt_coords = jnp.transpose(tgt_coords, (0, 2, 1))   # (B, 3, N)

        return self.compute_weighted_svd(src_coords, tgt_coords, weights, B, gt_Rt)

    __call__ = forward


# ----------------------------------------------------------------------------
# Pure-JAX reference (mirrors the PyTorch math) for a correctness check
# ----------------------------------------------------------------------------
def _reference(src, tgt, w):
    # src, tgt: (B, 3, N); w: (B, 1, N)
    wsum = jnp.sum(w, axis=2, keepdims=True) + 0.0001
    sc = jnp.sum(src * w, axis=2, keepdims=True) / wsum
    tc = jnp.sum(tgt * w, axis=2, keepdims=True) / wsum
    srcc = src - sc
    tgtc = tgt - tc
    W = jnp.matmul(tgtc * w, jnp.transpose(srcc, (0, 2, 1))) / wsum
    U, _, Vh = jnp.linalg.svd(W)
    det_UV = jnp.linalg.det(U) * jnp.linalg.det(Vh)
    s_diag = jnp.concatenate([jnp.ones((src.shape[0], 2)), det_UV[:, None]], axis=1)
    R = jnp.einsum("bij,bj,bjk->bik", U, s_diag, Vh)
    t1 = sc - jnp.einsum("bji,bjk->bik", R, tc)
    t = -jnp.einsum("bij,bjk->bik", R, t1)
    return R, t


if __name__ == "__main__":
    key = jax.random.PRNGKey(0)
    k1, k2, k3, k4 = jax.random.split(key, 4)

    B, N = 2, 256  # B batches of N keypoint matches
    config = {"window_size": 2, "gpuid": 0}

    # src / tgt 2-D keypoints (metric frame), related by a small rotation +
    # translation + noise
    src = jax.random.normal(k1, (B, N, 2), dtype=jnp.float32) * 5.0
    theta = jnp.array([0.1, -0.2], dtype=jnp.float32)
    c, s = jnp.cos(theta), jnp.sin(theta)
    Rgt2 = jnp.stack([jnp.stack([c, -s], -1), jnp.stack([s, c], -1)], -2)  # (B,2,2)
    tgt = jnp.einsum("bij,bnj->bni", Rgt2, src) + jnp.array([[1.0, -0.5]])
    tgt = tgt + 0.01 * jax.random.normal(k2, (B, N, 2), dtype=jnp.float32)

    # positive per-point weights, shape (B, 1, N)
    weights = jax.nn.softplus(jax.random.normal(k3, (B, 1, N), dtype=jnp.float32))

    svd = SVD(config)
    R, t = svd(src, tgt, weights, convert_from_pixels=False, gt_Rt=None)
    R, t = jax.block_until_ready((R, t))

    # check against a pure-JAX reference of the same math
    src3 = jnp.transpose(jnp.pad(src, ((0, 0), (0, 0), (0, 1))), (0, 2, 1))
    tgt3 = jnp.transpose(jnp.pad(tgt, ((0, 0), (0, 0), (0, 1))), (0, 2, 1))
    R_ref, t_ref = _reference(src3, tgt3, weights)
    assert R.shape == (B, 3, 3) and t.shape == (B, 3, 1)
    assert jnp.allclose(R, R_ref, atol=1e-4), "rotation mismatch"
    assert jnp.allclose(t, t_ref, atol=1e-4), "translation mismatch"

    print("KERNEL_OK")
</pallas_src>

<mosaic_0001>
module attributes {stable_mosaic.version = 11 : i64} {
  func.func @_wgram_kernel(%arg0: i32, %arg1: i32, %arg2: memref<1x3x256xf32, #tpu.memory_space<vmem>>, %arg3: memref<1x3x256xf32, #tpu.memory_space<vmem>>, %arg4: memref<1x1x256xf32, #tpu.memory_space<vmem>>, %arg5: memref<1x3x1xf32, #tpu.memory_space<vmem>>, %arg6: memref<1x3x1xf32, #tpu.memory_space<vmem>>, %arg7: memref<1x1x16xf32, #tpu.memory_space<vmem>>, %arg8: memref<1x16xf32, #tpu.memory_space<vmem>>) attributes {dimension_semantics = [#tpu.dimension_semantics<parallel>, #tpu.dimension_semantics<arbitrary>], iteration_bounds = array<i64: 2, 1>, scalar_prefetch = 0 : i64, scratch_operands = 1 : i64, tpu.core_type = #tpu.core_type<tc>, window_params = [{transform_indices = @transform_0, window_bounds = array<i64: 1, 3, 256>}, {transform_indices = @transform_1, window_bounds = array<i64: 1, 3, 256>}, {transform_indices = @transform_2, window_bounds = array<i64: 1, 1, 256>}, {transform_indices = @transform_3, window_bounds = array<i64: 1, 3, 1>}, {transform_indices = @transform_4, window_bounds = array<i64: 1, 3, 1>}, {transform_indices = @transform_5, window_bounds = array<i64: 1, 1, 16>}]} {
    %c0_i32 = arith.constant 0 : i32
    %0 = arith.cmpi eq, %arg1, %c0_i32 : i32
    %1 = arith.extui %0 : i1 to i32
    %c0_i32_0 = arith.constant 0 : i32
    %2 = arith.cmpi ne, %1, %c0_i32_0 : i32
    scf.if %2 {
      %cst_38 = arith.constant 0.000000e+00 : f32
      %46 = vector.broadcast %cst_38 : f32 to vector<1x16xf32>
      %c0_39 = arith.constant 0 : index
      %c0_40 = arith.constant 0 : index
      %47 = vector.load %arg8[%c0_39, %c0_40] : memref<1x16xf32, #tpu.memory_space<vmem>>, vector<1x16xf32>
      tpu.vector_store %arg8[%c0_39, %c0_40], %46 {strides = array<i32>} : memref<1x16xf32, #tpu.memory_space<vmem>>, vector<1x16xf32>,
    } else {
    }
    %c0 = arith.constant 0 : index
    %c0_1 = arith.constant 0 : index
    %c0_2 = arith.constant 0 : index
    %3 = vector.load %arg4[%c0, %c0_1, %c0_2] : memref<1x1x256xf32, #tpu.memory_space<vmem>>, vector<1x1x256xf32>
    %c0_3 = arith.constant 0 : index
    %c0_4 = arith.constant 0 : index
    %c0_5 = arith.constant 0 : index
    %4 = vector.load %arg2[%c0_3, %c0_4, %c0_5] : memref<1x3x256xf32, #tpu.memory_space<vmem>>, vector<1x3x256xf32>
    %c0_6 = arith.constant 0 : index
    %c0_7 = arith.constant 0 : index
    %c0_8 = arith.constant 0 : index
    %5 = vector.load %arg5[%c0_6, %c0_7, %c0_8] : memref<1x3x1xf32, #tpu.memory_space<vmem>>, vector<1x3x1xf32>
    %6 = vector.broadcast %5 : vector<1x3x1xf32> to vector<1x3x256xf32>
    %7 = arith.subf %4, %6 : vector<1x3x256xf32>
    %8 = vector.broadcast %3 : vector<1x1x256xf32> to vector<1x3x256xf32>
    %9 = arith.mulf %7, %8 : vector<1x3x256xf32>
    %c0_9 = arith.constant 0 : index
    %c0_10 = arith.constant 0 : index
    %c0_11 = arith.constant 0 : index
    %10 = vector.load %arg3[%c0_9, %c0_10, %c0_11] : memref<1x3x256xf32, #tpu.memory_space<vmem>>, vector<1x1x256xf32>
    %c0_12 = arith.constant 0 : index
    %c0_13 = arith.constant 0 : index
    %c0_14 = arith.constant 0 : index
    %11 = vector.load %arg6[%c0_12, %c0_13, %c0_14] : memref<1x3x1xf32, #tpu.memory_space<vmem>>, vector<1x1x1xf32>
    %12 = vector.broadcast %11 : vector<1x1x1xf32> to vector<1x1x256xf32>
    %13 = arith.subf %10, %12 : vector<1x1x256xf32>
    %14 = vector.broadcast %13 : vector<1x1x256xf32> to vector<1x3x256xf32>
    %15 = arith.mulf %9, %14 : vector<1x3x256xf32>
    %cst = arith.constant dense<0.000000e+00> : vector<1x3xf32>
    %16 = vector.multi_reduction <add>, %15, %cst [2] : vector<1x3x256xf32> to vector<1x3xf32>
    %17 = arith.mulf %3, %13 : vector<1x1x256xf32>
    %cst_15 = arith.constant dense<0.000000e+00> : vector<1x1xf32>
    %18 = vector.multi_reduction <add>, %17, %cst_15 [2] : vector<1x1x256xf32> to vector<1x1xf32>
    %c0_16 = arith.constant 0 : index
    %c1 = arith.constant 1 : index
    %c0_17 = arith.constant 0 : index
    %19 = vector.load %arg3[%c0_16, %c1, %c0_17] : memref<1x3x256xf32, #tpu.memory_space<vmem>>, vector<1x1x256xf32>
    %c0_18 = arith.constant 0 : index
    %c1_19 = arith.constant 1 : index
    %c0_20 = arith.constant 0 : index
    %20 = vector.load %arg6[%c0_18, %c1_19, %c0_20] : memref<1x3x1xf32, #tpu.memory_space<vmem>>, vector<1x1x1xf32>
    %21 = vector.broadcast %20 : vector<1x1x1xf32> to vector<1x1x256xf32>
    %22 = arith.subf %19, %21 : vector<1x1x256xf32>
    %23 = vector.broadcast %22 : vector<1x1x256xf32> to vector<1x3x256xf32>
    %24 = arith.mulf %9, %23 : vector<1x3x256xf32>
    %cst_21 = arith.constant dense<0.000000e+00> : vector<1x3xf32>
    %25 = vector.multi_reduction <add>, %24, %cst_21 [2] : vector<1x3x256xf32> to vector<1x3xf32>
    %26 = arith.mulf %3, %22 : vector<1x1x256xf32>
    %cst_22 = arith.constant dense<0.000000e+00> : vector<1x1xf32>
    %27 = vector.multi_reduction <add>, %26, %cst_22 [2] : vector<1x1x256xf32> to vector<1x1xf32>
    %c0_23 = arith.constant 0 : index
    %c2 = arith.constant 2 : index
    %c0_24 = arith.constant 0 : index
    %28 = vector.load %arg3[%c0_23, %c2, %c0_24] : memref<1x3x256xf32, #tpu.memory_space<vmem>>, vector<1x1x256xf32>
    %c0_25 = arith.constant 0 : index
    %c2_26 = arith.constant 2 : index
    %c0_27 = arith.constant 0 : index
    %29 = vector.load %arg6[%c0_25, %c2_26, %c0_27] : memref<1x3x1xf32, #tpu.memory_space<vmem>>, vector<1x1x1xf32>
    %30 = vector.broadcast %29 : vector<1x1x1xf32> to vector<1x1x256xf32>
    %31 = arith.subf %28, %30 : vector<1x1x256xf32>
    %32 = vector.broadcast %31 : vector<1x1x256xf32> to vector<1x3x256xf32>
    %33 = arith.mulf %9, %32 : vector<1x3x256xf32>
    %cst_28 = arith.constant dense<0.000000e+00> : vector<1x3xf32>
    %34 = vector.multi_reduction <add>, %33, %cst_28 [2] : vector<1x3x256xf32> to vector<1x3xf32>
    %35 = arith.mulf %3, %31 : vector<1x1x256xf32>
    %cst_29 = arith.constant dense<0.000000e+00> : vector<1x1xf32>
    %36 = vector.multi_reduction <add>, %35, %cst_29 [2] : vector<1x1x256xf32> to vector<1x1xf32>
    %cst_30 = arith.constant dense<0.000000e+00> : vector<1x3xf32>
    %37 = vector.multi_reduction <add>, %9, %cst_30 [2] : vector<1x3x256xf32> to vector<1x3xf32>
    %cst_31 = arith.constant dense<0.000000e+00> : vector<1x1xf32>
    %38 = vector.multi_reduction <add>, %3, %cst_31 [2] : vector<1x1x256xf32> to vector<1x1xf32>
    %c0_32 = arith.constant 0 : index
    %c0_33 = arith.constant 0 : index
    %39 = vector.load %arg8[%c0_32, %c0_33] : memref<1x16xf32, #tpu.memory_space<vmem>>, vector<1x16xf32>
    %40 = tpu.concatenate %16, %18, %25, %27, %34, %36, %37, %38 in 1 : vector<1x3xf32>, vector<1x1xf32>, vector<1x3xf32>, vector<1x1xf32>, vector<1x3xf32>, vector<1x1xf32>, vector<1x3xf32>, vector<1x1xf32> -> vector<1x16xf32>
    %41 = arith.addf %39, %40 : vector<1x16xf32>
    %c0_34 = arith.constant 0 : index
    %c0_35 = arith.constant 0 : index
    %42 = vector.load %arg8[%c0_34, %c0_35] : memref<1x16xf32, #tpu.memory_space<vmem>>, vector<1x16xf32>
    tpu.vector_store %arg8[%c0_34, %c0_35], %41 {strides = array<i32>} : memref<1x16xf32, #tpu.memory_space<vmem>>, vector<1x16xf32>,
    %c0_i32_36 = arith.constant 0 : i32
    %43 = arith.cmpi eq, %arg1, %c0_i32_36 : i32
    %44 = arith.extui %43 : i1 to i32
    %c0_i32_37 = arith.constant 0 : i32
    %45 = arith.cmpi ne, %44, %c0_i32_37 : i32
    scf.if %45 {
      %c0_38 = arith.constant 0 : index
      %c0_39 = arith.constant 0 : index
      %46 = vector.load %arg8[%c0_38, %c0_39] : memref<1x16xf32, #tpu.memory_space<vmem>>, vector<1x16xf32>
      %47 = vector.shape_cast %46 : vector<1x16xf32> to vector<1x1x16xf32>
      %c0_40 = arith.constant 0 : index
      %c0_41 = arith.constant 0 : index
      %c0_42 = arith.constant 0 : index
      %48 = vector.load %arg7[%c0_40, %c0_41, %c0_42] : memref<1x1x16xf32, #tpu.memory_space<vmem>>, vector<1x1x16xf32>
      tpu.vector_store %arg7[%c0_40, %c0_41, %c0_42], %47 {strides = array<i32>} : memref<1x1x16xf32, #tpu.memory_space<vmem>>, vector<1x1x16xf32>,
    } else {
    }
    return
  }
  func.func @transform_0(%arg0: i32, %arg1: i32) -> (i32, i32, i32) {
    %c0_i32 = arith.constant 0 : i32
    %c0_i32_0 = arith.constant 0 : i32
    return %arg0, %c0_i32, %arg1 : i32, i32, i32
  }
  func.func @transform_1(%arg0: i32, %arg1: i32) -> (i32, i32, i32) {
    %c0_i32 = arith.constant 0 : i32
    %c0_i32_0 = arith.constant 0 : i32
    return %arg0, %c0_i32, %arg1 : i32, i32, i32
  }
  func.func @transform_2(%arg0: i32, %arg1: i32) -> (i32, i32, i32) {
    %c0_i32 = arith.constant 0 : i32
    %c0_i32_0 = arith.constant 0 : i32
    return %arg0, %c0_i32, %arg1 : i32, i32, i32
  }
  func.func @transform_3(%arg0: i32, %arg1: i32) -> (i32, i32, i32) {
    %c0_i32 = arith.constant 0 : i32
    %c0_i32_0 = arith.constant 0 : i32
    %c0_i32_1 = arith.constant 0 : i32
    return %arg0, %c0_i32, %c0_i32_0 : i32, i32, i32
  }
  func.func @transform_4(%arg0: i32, %arg1: i32) -> (i32, i32, i32) {
    %c0_i32 = arith.constant 0 : i32
    %c0_i32_0 = arith.constant 0 : i32
    %c0_i32_1 = arith.constant 0 : i32
    return %arg0, %c0_i32, %c0_i32_0 : i32, i32, i32
  }
  func.func @transform_5(%arg0: i32, %arg1: i32) -> (i32, i32, i32) {
    %c0_i32 = arith.constant 0 : i32
    %c0_i32_0 = arith.constant 0 : i32
    %c0_i32_1 = arith.constant 0 : i32
    return %arg0, %c0_i32, %c0_i32_0 : i32, i32, i32
  }
}

</mosaic_0001>

<llo_original>
// kernel: tpu_custom_call.1
$region0: #{tpu_custom_call.1}
  #allocation0 [shape = 'u32[]', space=smem, size = 0x4, offset = 0x4, fixed_abs, tag = 'smem constant byte address 0x4 - core index']
  #allocation1 [shape = 'u32[72,128]{1,0:T(1,128)}', space=vmem, size = 0x9000, scoped, tag = 'internal scratch']
  #allocation2 [shape = 'f32[1,16]{1,0:T(1,128)}', space=vmem, size = 0x200, scoped, tag = 'scratch operand']
  %s0 = inlined_call_operand.vmem [shape: f32[2,3,256], index: 0, kind: input, shape index: {}]
  %s1 = inlined_call_operand.vmem [shape: f32[2,3,256], index: 1, kind: input, shape index: {}]
  %s2 = inlined_call_operand.vmem [shape: f32[2,1,256], index: 2, kind: input, shape index: {}]
  %s3 = inlined_call_operand.vmem [shape: f32[2,3,1], index: 3, kind: input, shape index: {}]
  %s4 = inlined_call_operand.vmem [shape: f32[2,3,1], index: 4, kind: input, shape index: {}]
  %s5 = inlined_call_operand.hbm [shape: f32[2,1,16], index: 5, kind: output, shape index: {}]
  %s6 = sld [smem:[#allocation0]]
  $region61: #{tpu_custom_call.1} parent=0
    _
  %s8 = ssub.s32 1, %s6
  %s9 = scalar_select 0, %s8, %s6
  $region1: #{tpu_custom_call.1} parent=0
    #allocation3 [shape = 'u8[1024]{0}', space=vmem, size = 0x400, scoped, tag = 'output window, operand 0']
    #allocation4 [shape = 's32[2]{0}', space=sflag, size = 0x8, scoped, tag = 'scoped memory for tpu_custom_call.1']
    %10 = vsyncpa [#allocation4], 0
    %s11 = scalar_lea.sflag [#allocation4], 1
    %12 = vsyncpa %s11, 0
    loop: start=0, step=1, limit=4
    $region2: #{tpu_custom_call.1} parent=1 // loop_pre_header
      _
    $region3: #{tpu_custom_call.1} parent=1 // loop_header
      %s14 = sphi 0, %s18
      %p15 = scmp.ge.s32.totalorder %s14, 4
      %s21 = sphi 0, %s33
      %s22 = sphi 0, %s29
      %s23 = sphi 0, %s21
      %s24 = sphi 0, %s22
      %s25 = sphi 0, %s23
      %s26 = sphi 0, %s24
      %s38 = sphi 0, %s40
      %s41 = sphi 0, %s38
      %s42 = sphi 0, %s41
      %s58 = sphi 0, %s42
      %s66 = sphi 0, %s68
      %s69 = sphi 0, %s66
      %s70 = sphi 0, %s69
      %s86 = sphi 0, %s70
      %s94 = sphi 0, %s96
      %s97 = sphi 0, %s94
      %s98 = sphi 0, %s97
      %s114 = sphi 0, %s98
      %s120 = sphi 0, %s122
      %s123 = sphi 0, %s120
      %s124 = sphi 0, %s123
      %s140 = sphi 0, %s124
      %s146 = sphi 0, %s148
      %s149 = sphi 0, %s146
      %s150 = sphi 0, %s149
      %s166 = sphi 0, %s150
      %s172 = sphi 0, %s174
      %s175 = sphi 0, %s172
      %s176 = sphi 0, %s175
      %s192 = sphi 0, %s176
    $region4: #{tpu_custom_call.1} parent=1 // loop_header_branch
      %17 = sbr.rel (%p15) target = $region8
    $region5: #{tpu_custom_call.1} parent=1 // loop_body
      %s19 = ssub.s32 %s14, 1
      %s20 = ssub.s32 %s14, 2
      %s27 = sadd.s32 1, %s22
      %p28 = scmp.ge.s32.totalorder %s27, 1
      %s29 = scalar_select %p28, 0, %s27
      %s30 = sadd.s32 1, %s21
      %s31 = scalar_select %p28, %s30, %s21
      %p32 = scmp.ge.s32.totalorder %s31, 2
      %s33 = scalar_select %p32, 0, %s31
      %s34 = ssub.s32 %s21, %s33
      %s35 = ssub.s32 %s22, %s29
      %s36 = sor.u32 %s34, %s35
      %p37 = scmp.eq.s32.totalorder %s36, 0
      %s39 = sadd.s32 %s38, 1
      %s40 = scalar_select %p37, %s38, %s39
      %p43 = pneg %p37
      %p44 = scmp.eq.s32.totalorder %s14, 1
      %p45 = por %p43, %p44
      %p46 = scmp.ne.s32.totalorder %s38, %s41
      %p47 = scmp.eq.s32.totalorder %s14, 0
      %p48 = por %p46, %p47
      %p49 = scmp.ne.s32.totalorder %s38, %s41
      %p50 = scmp.eq.s32.totalorder %s19, 1
      %p51 = por %p49, %p50
      %p52 = scmp.ne.s32.totalorder %s41, %s42
      %p53 = scmp.eq.s32.totalorder %s19, 0
      %p54 = por %p52, %p53
      %p55 = scmp.ne.s32.totalorder %s41, %s42
      %p56 = scmp.eq.s32.totalorder %s20, 1
      %p57 = por %p55, %p56
      %p59 = scmp.ne.s32.totalorder %s42, %s58
      %p60 = scmp.eq.s32.totalorder %s20, 0
      %p61 = por %p59, %p60
      %s62 = ssub.s32 %s21, %s33
      %s63 = ssub.s32 %s22, %s29
      %s64 = sor.u32 %s62, %s63
      %p65 = scmp.eq.s32.totalorder %s64, 0
      %s67 = sadd.s32 %s66, 1
      %s68 = scalar_select %p65, %s66, %s67
      %p71 = pneg %p65
      %p72 = scmp.eq.s32.totalorder %s14, 1
      %p73 = por %p71, %p72
      %p74 = scmp.ne.s32.totalorder %s66, %s69
      %p75 = scmp.eq.s32.totalorder %s14, 0
      %p76 = por %p74, %p75
      %p77 = scmp.ne.s32.totalorder %s66, %s69
      %p78 = scmp.eq.s32.totalorder %s19, 1
      %p79 = por %p77, %p78
      %p80 = scmp.ne.s32.totalorder %s69, %s70
      %p81 = scmp.eq.s32.totalorder %s19, 0
      %p82 = por %p80, %p81
      %p83 = scmp.ne.s32.totalorder %s69, %s70
      %p84 = scmp.eq.s32.totalorder %s20, 1
      %p85 = por %p83, %p84
      %p87 = scmp.ne.s32.totalorder %s70, %s86
      %p88 = scmp.eq.s32.totalorder %s20, 0
      %p89 = por %p87, %p88
      %s90 = ssub.s32 %s21, %s33
      %s91 = ssub.s32 %s22, %s29
      %s92 = sor.u32 %s90, %s91
      %p93 = scmp.eq.s32.totalorder %s92, 0
      %s95 = sadd.s32 %s94, 1
      %s96 = scalar_select %p93, %s94, %s95
      %p99 = pneg %p93
      %p100 = scmp.eq.s32.totalorder %s14, 1
      %p101 = por %p99, %p100
      %p102 = scmp.ne.s32.totalorder %s94, %s97
      %p103 = scmp.eq.s32.totalorder %s14, 0
      %p104 = por %p102, %p103
      %p105 = scmp.ne.s32.totalorder %s94, %s97
      %p106 = scmp.eq.s32.totalorder %s19, 1
      %p107 = por %p105, %p106
      %p108 = scmp.ne.s32.totalorder %s97, %s98
      %p109 = scmp.eq.s32.totalorder %s19, 0
      %p110 = por %p108, %p109
      %p111 = scmp.ne.s32.totalorder %s97, %s98
      %p112 = scmp.eq.s32.totalorder %s20, 1
      %p113 = por %p111, %p112
      %p115 = scmp.ne.s32.totalorder %s98, %s114
      %p116 = scmp.eq.s32.totalorder %s20, 0
      %p117 = por %p115, %p116
      %s118 = ssub.s32 %s21, %s33
      %p119 = scmp.eq.s32.totalorder %s118, 0
      %s121 = sadd.s32 %s120, 1
      %s122 = scalar_select %p119, %s120, %s121
      %p125 = pneg %p119
      %p126 = scmp.eq.s32.totalorder %s14, 1
      %p127 = por %p125, %p126
      %p128 = scmp.ne.s32.totalorder %s120, %s123
      %p129 = scmp.eq.s32.totalorder %s14, 0
      %p130 = por %p128, %p129
      %p131 = scmp.ne.s32.totalorder %s120, %s123
      %p132 = scmp.eq.s32.totalorder %s19, 1
      %p133 = por %p131, %p132
      %p134 = scmp.ne.s32.totalorder %s123, %s124
      %p135 = scmp.eq.s32.totalorder %s19, 0
      %p136 = por %p134, %p135
      %p137 = scmp.ne.s32.totalorder %s123, %s124
      %p138 = scmp.eq.s32.totalorder %s20, 1
      %p139 = por %p137, %p138
      %p141 = scmp.ne.s32.totalorder %s124, %s140
      %p142 = scmp.eq.s32.totalorder %s20, 0
      %p143 = por %p141, %p142
      %s144 = ssub.s32 %s21, %s33
      %p145 = scmp.eq.s32.totalorder %s144, 0
      %s147 = sadd.s32 %s146, 1
      %s148 = scalar_select %p145, %s146, %s147
      %p151 = pneg %p145
      %p152 = scmp.eq.s32.totalorder %s14, 1
      %p153 = por %p151, %p152
      %p154 = scmp.ne.s32.totalorder %s146, %s149
      %p155 = scmp.eq.s32.totalorder %s14, 0
      %p156 = por %p154, %p155
      %p157 = scmp.ne.s32.totalorder %s146, %s149
      %p158 = scmp.eq.s32.totalorder %s19, 1
      %p159 = por %p157, %p158
      %p160 = scmp.ne.s32.totalorder %s149, %s150
      %p161 = scmp.eq.s32.totalorder %s19, 0
      %p162 = por %p160, %p161
      %p163 = scmp.ne.s32.totalorder %s149, %s150
      %p164 = scmp.eq.s32.totalorder %s20, 1
      %p165 = por %p163, %p164
      %p167 = scmp.ne.s32.totalorder %s150, %s166
      %p168 = scmp.eq.s32.totalorder %s20, 0
      %p169 = por %p167, %p168
      %s170 = ssub.s32 %s21, %s33
      %p171 = scmp.eq.s32.totalorder %s170, 0
      %s173 = sadd.s32 %s172, 1
      %s174 = scalar_select %p171, %s172, %s173
      %p177 = pneg %p171
      %p178 = scmp.eq.s32.totalorder %s14, 1
      %p179 = por %p177, %p178
      %p180 = scmp.ne.s32.totalorder %s172, %s175
      %p181 = scmp.eq.s32.totalorder %s14, 0
      %p182 = por %p180, %p181
      %p183 = scmp.ne.s32.totalorder %s172, %s175
      %p184 = scmp.eq.s32.totalorder %s19, 1
      %p185 = por %p183, %p184
      %p186 = scmp.ne.s32.totalorder %s175, %s176
      %p187 = scmp.eq.s32.totalorder %s19, 0
      %p188 = por %p186, %p187
      %p189 = scmp.ne.s32.totalorder %s175, %s176
      %p190 = scmp.eq.s32.totalorder %s20, 1
      %p191 = por %p189, %p190
      %p193 = scmp.ne.s32.totalorder %s176, %s192
      %p194 = scmp.eq.s32.totalorder %s20, 0
      %p195 = por %p193, %p194
      %p196 = scmp.le.s32.totalorder 1, %s14
      %p197 = scmp.lt.s32.totalorder %s14, 3
      %p198 = pnand %p196, %p197
      %p199 = pneg %p198
      // Predicated region
      $region9: #{tpu_custom_call.1} parent=5 // pred_check
        _
      $region10: #{tpu_custom_call.1} parent=5 // pred_check_branch
        %201 = sbr.rel (%p198) target = $region12
      $region11: #{tpu_custom_call.1} parent=5 // pred_region
        %s202 = ssub.s32 %s14, 1
      $region12: #{tpu_custom_call.1} parent=5 // pred_fallthru
        _
      %p203 = scmp.lt.s32.totalorder %s14, 2
      // Predicated region
      $region13: #{tpu_custom_call.1} parent=5 // pred_check
        %p204 = pneg %p203
      $region14: #{tpu_custom_call.1} parent=5 // pred_check_branch
        %206 = sbr.rel (%p204) target = $region16
      $region15: #{tpu_custom_call.1} parent=5 // pred_region
        // Predicated region
        $region17: #{tpu_custom_call.1} parent=15 // pred_check
          %p207 = pneg %p48
        $region18: #{tpu_custom_call.1} parent=15 // pred_check_branch
          %209 = sbr.rel (%p207) target = $region20
        $region19: #{tpu_custom_call.1} parent=15 // pred_region
          %s210 = smul.u32 2, %s22
          %p211 = scmp.lt.s32.totalorder %s21, 1
          %s212 = scalar_select %p211, %s21, 1
          %p213 = scmp.lt.s32.totalorder %s210, 1
          %s214 = scalar_select %p213, %s210, 1
          %s215 = smul.addr %s212, 2
          %s216 = sadd.s32 %s214, %s215
          %s217 = smul.addr %s216, 4
          %s218 = scalar_lea.vmem %s0, %s217
          %s219 = smul.u32 2, %s22
        $region20: #{tpu_custom_call.1} parent=15 // pred_fallthru
          _
        // Predicated region
        $region21: #{tpu_custom_call.1} parent=15 // pred_check
          %p220 = pneg %p76
        $region22: #{tpu_custom_call.1} parent=15 // pred_check_branch
          %222 = sbr.rel (%p220) target = $region24
        $region23: #{tpu_custom_call.1} parent=15 // pred_region
          %s223 = smul.u32 2, %s22
          %p224 = scmp.lt.s32.totalorder %s21, 1
          %s225 = scalar_select %p224, %s21, 1
          %p226 = scmp.lt.s32.totalorder %s223, 1
          %s227 = scalar_select %p226, %s223, 1
          %s228 = smul.addr %s225, 2
          %s229 = sadd.s32 %s227, %s228
          %s230 = smul.addr %s229, 4
          %s231 = scalar_lea.vmem %s1, %s230
          %s232 = smul.u32 2, %s22
        $region24: #{tpu_custom_call.1} parent=15 // pred_fallthru
          _
        // Predicated region
        $region25: #{tpu_custom_call.1} parent=15 // pred_check
          %p233 = pneg %p104
        $region26: #{tpu_custom_call.1} parent=15 // pred_check_branch
          %235 = sbr.rel (%p233) target = $region28
        $region27: #{tpu_custom_call.1} parent=15 // pred_region
          %s236 = smul.u32 2, %s22
          %p237 = scmp.lt.s32.totalorder %s21, 1
          %s238 = scalar_select %p237, %s21, 1
          %p239 = scmp.lt.s32.totalorder %s236, 1
          %s240 = scalar_select %p239, %s236, 1
          %s241 = smul.addr %s238, 2
          %s242 = sadd.s32 %s240, %s241
          %s243 = scalar_lea.vmem %s2, %s242
          %s244 = smul.u32 2, %s22
        $region28: #{tpu_custom_call.1} parent=15 // pred_fallthru
          _
        // Predicated region
        $region29: #{tpu_custom_call.1} parent=15 // pred_check
          %p245 = pneg %p130
        $region30: #{tpu_custom_call.1} parent=15 // pred_check_branch
          %247 = sbr.rel (%p245) target = $region32
        $region31: #{tpu_custom_call.1} parent=15 // pred_region
          %p248 = scmp.lt.s32.totalorder %s21, 1
          %s249 = scalar_select %p248, %s21, 1
          %s250 = smul.addr %s249, 4
          %s251 = scalar_lea.vmem %s3, %s250
        $region32: #{tpu_custom_call.1} parent=15 // pred_fallthru
          _
        // Predicated region
        $region33: #{tpu_custom_call.1} parent=15 // pred_check
          %p252 = pneg %p156
        $region34: #{tpu_custom_call.1} parent=15 // pred_check_branch
          %254 = sbr.rel (%p252) target = $region36
        $region35: #{tpu_custom_call.1} parent=15 // pred_region
          %p255 = scmp.lt.s32.totalorder %s21, 1
          %s256 = scalar_select %p255, %s21, 1
          %s257 = smul.addr %s256, 4
          %s258 = scalar_lea.vmem %s4, %s257
        $region36: #{tpu_custom_call.1} parent=15 // pred_fallthru
          _
      $region16: #{tpu_custom_call.1} parent=5 // pred_fallthru
        _
      %p259 = scmp.le.s32.totalorder 1, %s14
      %p260 = scmp.lt.s32.totalorder %s14, 3
      %p261 = pnand %p259, %p260
      %p262 = pneg %p261
      // Predicated region
      $region37: #{tpu_custom_call.1} parent=5 // pred_check
        _
      $region38: #{tpu_custom_call.1} parent=5 // pred_check_branch
        %264 = sbr.rel (%p261) target = $region40
      $region39: #{tpu_custom_call.1} parent=5 // pred_region
        %s265 = ssub.s32 %s14, 1
        %s266 = smul.u32 2, %s24
        %p267 = scmp.lt.s32.totalorder %s23, 1
        %s268 = scalar_select %p267, %s23, 1
        %p269 = scmp.lt.s32.totalorder %s266, 1
        %s270 = scalar_select %p269, %s266, 1
        %s271 = smul.addr %s268, 2
        %s272 = sadd.s32 %s270, %s271
        %s273 = smul.addr %s272, 4
        %s274 = scalar_lea.vmem %s0, %s273
        %p275 = pneg %p54
        %p276 = pneg %p51
        %s277 = smul.u32 2, %s24
        %p278 = scmp.lt.s32.totalorder %s23, 1
        %s279 = scalar_select %p278, %s23, 1
        %p280 = scmp.lt.s32.totalorder %s277, 1
        %s281 = scalar_select %p280, %s277, 1
        %s282 = smul.addr %s279, 2
        %s283 = sadd.s32 %s281, %s282
        %s284 = smul.addr %s283, 4
        %s285 = scalar_lea.vmem %s1, %s284
        %p286 = pneg %p82
        %p287 = pneg %p79
        %s288 = smul.u32 2, %s24
        %p289 = scmp.lt.s32.totalorder %s23, 1
        %s290 = scalar_select %p289, %s23, 1
        %p291 = scmp.lt.s32.totalorder %s288, 1
        %s292 = scalar_select %p291, %s288, 1
        %s293 = smul.addr %s290, 2
        %s294 = sadd.s32 %s292, %s293
        %s295 = scalar_lea.vmem %s2, %s294
        %p296 = pneg %p110
        %p297 = pneg %p107
        %p298 = scmp.lt.s32.totalorder %s23, 1
        %s299 = scalar_select %p298, %s23, 1
        %s300 = smul.addr %s299, 4
        %s301 = scalar_lea.vmem %s3, %s300
        %p302 = pneg %p136
        %p303 = pneg %p133
        %p304 = scmp.lt.s32.totalorder %s23, 1
        %s305 = scalar_select %p304, %s23, 1
        %s306 = smul.addr %s305, 4
        %s307 = scalar_lea.vmem %s4, %s306
        %p308 = pneg %p162
        %p309 = pneg %p159
        %p310 = pneg %p188
        %p311 = pneg %p185
        %s312 = sand.u32 %s175, 1
        %s313 = scalar_lea.sflag [#allocation4], %s312
        %s314 = sand.u32 %s175, 1
        %s315 = scalar_lea.vmem [#allocation3], %s314
        %s316 = smul.u32 2, %s24
        %p317 = scmp.lt.s32.totalorder %s23, 1
        %s318 = scalar_select %p317, %s23, 1
        %p319 = scmp.lt.s32.totalorder %s316, 1
        %s320 = scalar_select %p319, %s316, 1
        %s321 = smul.addr %s318, 2
        %s322 = sadd.s32 %s320, %s321
        %s323 = smul.addr %s322, 4
        %s324 = scalar_lea.vmem %s0, %s323
        %s325 = smul.u32 2, %s24
        %s326 = smul.u32 2, %s24
        %p327 = scmp.lt.s32.totalorder %s23, 1
        %s328 = scalar_select %p327, %s23, 1
        %p329 = scmp.lt.s32.totalorder %s326, 1
        %s330 = scalar_select %p329, %s326, 1
        %s331 = smul.addr %s328, 2
        %s332 = sadd.s32 %s330, %s331
        %s333 = smul.addr %s332, 4
        %s334 = scalar_lea.vmem %s1, %s333
        %s335 = smul.u32 2, %s24
        %s336 = smul.u32 2, %s24
        %p337 = scmp.lt.s32.totalorder %s23, 1
        %s338 = scalar_select %p337, %s23, 1
        %p339 = scmp.lt.s32.totalorder %s336, 1
        %s340 = scalar_select %p339, %s336, 1
        %s341 = smul.addr %s338, 2
        %s342 = sadd.s32 %s340, %s341
        %s343 = scalar_lea.vmem %s2, %s342
        %s344 = smul.u32 2, %s24
        %p345 = scmp.lt.s32.totalorder %s23, 1
        %s346 = scalar_select %p345, %s23, 1
        %s347 = smul.addr %s346, 4
        %s348 = scalar_lea.vmem %s3, %s347
        %p349 = scmp.lt.s32.totalorder %s23, 1
        %s350 = scalar_select %p349, %s23, 1
        %s351 = smul.addr %s350, 4
        %s352 = scalar_lea.vmem %s4, %s351
        %p353 = scmp.eq.s32.totalorder %s24, 0
        // Predicated region
        $region41: #{tpu_custom_call.1} parent=39 // pred_check
          %p354 = pneg %p353
        $region42: #{tpu_custom_call.1} parent=39 // pred_check_branch
          %356 = sbr.rel (%p354) target = $region44
        $region43: #{tpu_custom_call.1} parent=39 // pred_region
          %vm357 = vcmask 122880
          %358 = vst.msk [vmem:[#allocation2] sm:$0x1] %vm357, 0.0
        $region44: #{tpu_custom_call.1} parent=39 // pred_fallthru
          _
        %v359 = vld [vmem:[%s343] sm:$0x3]
        %v360 = vld [vmem:[%s324] sm:$0x77]
        %v361 = vld [vmem:[%s348] sm:$0x7]
        %363 = vset.pattern.permute.xlu0 0
        %364 = vperm.xlu0 %363, %v361
        %v365 = vpop.permute.xlu0 %364
        %v367 = vunpack.c.l.s4 839922192
        %v368 = vunpack.c.0.s8 %v367
        %v369 = vperm.slane %v365, %v368
        %v371 = vsub.f32 %v360, %v369
        %v373 = vperm.slane %v359, 0
        %v374 = vperm.slane %v359, 1
        %v375 = vrot.slane %v374, 4
        %vm376 = vcmask 1043456
        %v377 = vsel %vm376, %v373, %v375
        %v379 = vmul.f32 %v371, %v377
        %v380 = vld [vmem:[%s334] ss:$4 sm:$0x3]
        %v381 = vld [vmem:[%s352] sm:$0x1]
        %383 = vset.pattern.permute.xlu0 0
        %384 = vperm.xlu0 %383, %v381
        %v385 = vpop.permute.xlu0 %384
        %v386 = vperm.slane %v385, 0
        %v388 = vsub.f32 %v380, %v386
        %v390 = vperm.slane %v388, 0
        %v391 = vperm.slane %v388, 1
        %v392 = vrot.slane %v391, 4
        %v393 = vsel %vm376, %v390, %v392
        %v395 = vmul.f32 %v379, %v393
        %397 = vst [vmem:[#allocation1] ss:$2 sm:$0xff] %v395
        %v398 = vld.sshfl [vmem:[#allocation1] sm:$0xff pattern:$0x75316420]
        %v399 = vld.sshfl [vmem:[#allocation1 + $0x8] sm:$0xff pattern:$0x75316420]
        %vm402 = vcmask 1042432
        %v403 = vsel %vm402, %v398, 0.0
        %v404 = vsel %vm402, %v399, 0.0
        %v405 = vadd.f32 %v403, %v404
        %406 = vadd.xlane.f32.xlu0 %v405
        %v407 = vpop.xlane.xlu0 %406
        %v408 = vmul.f32 %v359, %v388
        %v410 = vperm.slane %v408, 0
        %v411 = vperm.slane %v408, 1
        %vm414 = vcmask 1040384
        %v415 = vsel %vm414, %v410, 0.0
        %v416 = vsel %vm414, %v411, 0.0
        %v417 = vadd.f32 %v415, %v416
        %418 = vadd.xlane.f32.xlu0 %v417
        %v419 = vpop.xlane.xlu0 %418
        %s420 = scalar_lea.vmem %s334, 1
        %v421 = vld [vmem:[%s420] ss:$4 sm:$0x3]
        %v422 = vld [vmem:[%s352 + $0x1] sm:$0x1]
        %424 = vset.pattern.permute.xlu0 0
        %425 = vperm.xlu0 %424, %v422
        %v426 = vpop.permute.xlu0 %425
        %v427 = vperm.slane %v426, 0
        %v429 = vsub.f32 %v421, %v427
        %v431 = vperm.slane %v429, 0
        %v432 = vperm.slane %v429, 1
        %v433 = vrot.slane %v432, 4
        %v434 = vsel %vm376, %v431, %v433
        %v436 = vmul.f32 %v379, %v434
        %438 = vst [vmem:[#allocation1] ss:$2 sm:$0xff] %v436
        %v439 = vld.sshfl [vmem:[#allocation1] sm:$0xff pattern:$0x75316420]
        %v440 = vld.sshfl [vmem:[#allocation1 + $0x8] sm:$0xff pattern:$0x75316420]
        %v443 = vsel %vm402, %v439, 0.0
        %v444 = vsel %vm402, %v440, 0.0
        %v445 = vadd.f32 %v443, %v444
        %446 = vadd.xlane.f32.xlu0 %v445
        %v447 = vpop.xlane.xlu0 %446
        %v448 = vmul.f32 %v359, %v429
        %v450 = vperm.slane %v448, 0
        %v451 = vperm.slane %v448, 1
        %v454 = vsel %vm414, %v450, 0.0
        %v455 = vsel %vm414, %v451, 0.0
        %v456 = vadd.f32 %v454, %v455
        %457 = vadd.xlane.f32.xlu0 %v456
        %v458 = vpop.xlane.xlu0 %457
        %s459 = scalar_lea.vmem %s334, 2
        %v460 = vld [vmem:[%s459] ss:$4 sm:$0x3]
        %v461 = vld [vmem:[%s352 + $0x2] sm:$0x1]
        %463 = vset.pattern.permute.xlu0 0
        %464 = vperm.xlu0 %463, %v461
        %v465 = vpop.permute.xlu0 %464
        %v466 = vperm.slane %v465, 0
        %v468 = vsub.f32 %v460, %v466
        %v470 = vperm.slane %v468, 0
        %v471 = vperm.slane %v468, 1
        %v472 = vrot.slane %v471, 4
        %v473 = vsel %vm376, %v470, %v472
        %v475 = vmul.f32 %v379, %v473
        %477 = vst [vmem:[#allocation1] ss:$2 sm:$0xff] %v475
        %v478 = vld.sshfl [vmem:[#allocation1] sm:$0xff pattern:$0x75316420]
        %v479 = vld.sshfl [vmem:[#allocation1 + $0x8] sm:$0xff pattern:$0x75316420]
        %v482 = vsel %vm402, %v478, 0.0
        %v483 = vsel %vm402, %v479, 0.0
        %v484 = vadd.f32 %v482, %v483
        %485 = vadd.xlane.f32.xlu0 %v484
        %v486 = vpop.xlane.xlu0 %485
        %v487 = vmul.f32 %v359, %v468
        %v489 = vperm.slane %v487, 0
        %v490 = vperm.slane %v487, 1
        %v493 = vsel %vm414, %v489, 0.0
        %v494 = vsel %vm414, %v490, 0.0
        %v495 = vadd.f32 %v493, %v494
        %496 = vadd.xlane.f32.xlu0 %v495
        %v497 = vpop.xlane.xlu0 %496
        %499 = vst [vmem:[#allocation1] ss:$2 sm:$0xff] %v379
        %v500 = vld.sshfl [vmem:[#allocation1] sm:$0xff pattern:$0x75316420]
        %v501 = vld.sshfl [vmem:[#allocation1 + $0x8] sm:$0xff pattern:$0x75316420]
        %v504 = vsel %vm402, %v500, 0.0
        %v505 = vsel %vm402, %v501, 0.0
        %v506 = vadd.f32 %v504, %v505
        %507 = vadd.xlane.f32.xlu0 %v506
        %v508 = vpop.xlane.xlu0 %507
        %v511 = vsel %vm414, %v373, 0.0
        %v512 = vsel %vm414, %v374, 0.0
        %v513 = vadd.f32 %v511, %v512
        %514 = vadd.xlane.f32.xlu0 %v513
        %v515 = vpop.xlane.xlu0 %514
        %v516 = vld [vmem:[#allocation2] sm:$0x1]
        %v518 = vlaneseq
        %v519 = vand.u32 %v518, 127
        %v520 = vperm.slane %v407, %v519
        %v523 = vadd.s32 %v519, 4294967292
        %v524 = vperm.slane %v447, %v523
        %v527 = vadd.s32 %v519, 4294967288
        %v528 = vperm.slane %v486, %v527
        %v531 = vadd.s32 %v519, 4294967284
        %v532 = vperm.slane %v508, %v531
        %vm534 = vcmask 23552
        %v535 = vsel %vm534, %v520, %v419
        %vm536 = vcmask 31744
        %v537 = vsel %vm536, %v535, %v524
        %vm538 = vcmask 56320
        %v539 = vsel %vm538, %v537, %v458
        %vm540 = vcmask 64512
        %v541 = vsel %vm540, %v539, %v528
        %vm542 = vcmask 89088
        %v543 = vsel %vm542, %v541, %v497
        %vm544 = vcmask 97280
        %v545 = vsel %vm544, %v543, %v532
        %vm546 = vcmask 121856
        %v547 = vsel %vm546, %v545, %v515
        %v548 = vadd.f32 %v516, %v547
        %vm549 = vcmask 122880
        %550 = vst.msk [vmem:[#allocation2] sm:$0x1] %vm549, %v548
        // Predicated region
        $region45: #{tpu_custom_call.1} parent=39 // pred_check
          %p551 = pneg %p353
        $region46: #{tpu_custom_call.1} parent=39 // pred_check_branch
          %553 = sbr.rel (%p551) target = $region48
        $region47: #{tpu_custom_call.1} parent=39 // pred_region
          %v554 = vld [vmem:[#allocation2] sm:$0x1]
          %555 = vst.msk [vmem:[%s315] sm:$0x1] %vm549, %v554
        $region48: #{tpu_custom_call.1} parent=39 // pred_fallthru
          _
        %s556 = sand.u32 %s175, 1
        %s557 = scalar_lea.sflag [#allocation4], %s556
        %s558 = sand.u32 %s175, 1
        %s559 = scalar_lea.vmem [#allocation3], %s558
        // Predicated region
        $region49: #{tpu_custom_call.1} parent=39 // pred_check
          %p560 = pneg %p185
        $region50: #{tpu_custom_call.1} parent=39 // pred_check_branch
          %562 = sbr.rel (%p560) target = $region52
        $region51: #{tpu_custom_call.1} parent=39 // pred_region
          %564 = vsyncadd %s557, 0
          %s565 = scalar_lea.hbm %s5, %s23
          %s567 = sshll.u32 %s559, 4
          %s568 = int_to_ptr.vmem [resolvable:$true] %s567
          %s569 = sshll.u32 %s565, 4
          %s570 = int_to_ptr.hbm [resolvable:$true] %s569
          %572 = dma.vmem_to_hbm [thread:$0]  %s568, 16, %s570, %s557
        $region52: #{tpu_custom_call.1} parent=39 // pred_fallthru
          _
      $region40: #{tpu_custom_call.1} parent=5 // pred_fallthru
        _
      %p573 = scmp.le.s32.totalorder 2, %s14
      // Predicated region
      $region53: #{tpu_custom_call.1} parent=5 // pred_check
        %p574 = pneg %p573
      $region54: #{tpu_custom_call.1} parent=5 // pred_check_branch
        %576 = sbr.rel (%p574) target = $region56
      $region55: #{tpu_custom_call.1} parent=5 // pred_region
        %s577 = ssub.s32 %s14, 2
        // Predicated region
        $region57: #{tpu_custom_call.1} parent=55 // pred_check
          %p578 = pneg %p191
        $region58: #{tpu_custom_call.1} parent=55 // pred_check_branch
          %580 = sbr.rel (%p578) target = $region60
        $region59: #{tpu_custom_call.1} parent=55 // pred_region
          %s581 = sand.u32 %s176, 1
          %s582 = scalar_lea.sflag [#allocation4], %s581
          %s583 = sand.u32 %s176, 1
          %s584 = scalar_lea.vmem [#allocation3], %s583
          %586 = dma.done %s582, 16
        $region60: #{tpu_custom_call.1} parent=55 // pred_fallthru
          _
      $region56: #{tpu_custom_call.1} parent=5 // pred_fallthru
        _
    $region6: #{tpu_custom_call.1} parent=1 // loop_footer
      %s18 = sadd.s32 1, %s14
    $region7: #{tpu_custom_call.1} parent=1 // loop_footer_branch
      %13 = sbr.rel target = $region3
    $region8: #{tpu_custom_call.1} parent=1 // loop_exit
      _
    %587 = vsyncpa [#allocation4], 1
    %s588 = scalar_lea.sflag [#allocation4], 1
    %589 = vsyncpa %s588, 1

</llo_original>
